<compile_context>
chip_gen: v7x
topology: tpu7x:2x2x1
jax: 0.10.0
libtpu: 0.0.40
codegen_flags: <defaults>
</compile_context>

<pallas_src>
import jax
import jax.numpy as jnp
from jax.experimental import pallas as pl
from jax.experimental.pallas import tpu as pltpu


def _mlp_kernel(bert_ref, feat_ref, w1b_ref, w1f_ref, b1_ref, w2_ref, b2_ref,
                o_ref):
    # fc1: two MXU dots (bf16 operands, f32 accumulation) into one accumulator.
    #   bert @ W1[:Db] + feat @ W1[Db:]  ==  concat(bert, feat) @ W1
    h = jnp.dot(bert_ref[...], w1b_ref[...], preferred_element_type=jnp.float32)
    h = h + jnp.dot(feat_ref[...], w1f_ref[...], preferred_element_type=jnp.float32)
    h = jnp.tanh(h + b1_ref[...])                       # f32 VPU add + EUP tanh, (TB, H)

    # fc2 on the MXU, lane-dense:
    #   (1, H) @ (TB, H)^T -> (1, TB)   (batch on the lane axis of the output)
    o = jax.lax.dot_general(
        w2_ref[...], h.astype(jnp.bfloat16),
        dimension_numbers=(((1,), (1,)), ((), ())),
        preferred_element_type=jnp.float32)

    # bias (scalar from SMEM) + sigmoid, unmasked lane-dense store.
    o_ref[...] = jax.nn.sigmoid(o + b2_ref[0]).astype(o_ref.dtype)


def neural_net_forward(feature_vector, bert_vector, kparams, *, block_batch=8192):
    """Fused fc1 -> tanh -> fc2 -> sigmoid in a single pallas_call.

    Returns a (B, 1) float32 array (same as the PyTorch module's forward).
    """
    # Activations stream as bf16. Ideally the producer already emits bf16 so
    # these casts are no-ops; if it hands us f32 we pay one cheap cast here.
    if bert_vector.dtype != jnp.bfloat16:
        bert_vector = bert_vector.astype(jnp.bfloat16)
    if feature_vector.dtype != jnp.bfloat16:
        feature_vector = feature_vector.astype(jnp.bfloat16)

    w1b, w1f = kparams["w1_bert"], kparams["w1_feat"]
    b1, w2r, b2 = kparams["b1"], kparams["w2_row"], kparams["b2"]

    B, Df = feature_vector.shape
    Db = bert_vector.shape[1]
    H = w1b.shape[1]

    # Batch tile: whole batch when small, otherwise a large pipelined tile
    # (multiple of 128 so the lane-dense output tiling stays aligned).
    if B <= block_batch:
        TB = B
    else:
        assert block_batch % 128 == 0, "block_batch must be a multiple of 128"
        TB = block_batch
    grid = (pl.cdiv(B, TB),)

    flops = 2 * B * (Db + Df) * H + 2 * B * H            # fc1 + fc2
    bytes_accessed = (
        (feature_vector.size + bert_vector.size) * 2     # bf16 activations in
        + (w1b.size + w1f.size + w2r.size) * 2            # bf16 weights
        + b1.size * 4 + b2.size * 4                       # f32 biases
        + B * 4)                                          # f32 output

    out = pl.pallas_call(
        _mlp_kernel,
        out_shape=jax.ShapeDtypeStruct((1, B), jnp.float32),
        grid=grid,
        in_specs=[
            pl.BlockSpec((TB, Db), lambda i: (i, 0)),     # bert tile (pipelined)
            pl.BlockSpec((TB, Df), lambda i: (i, 0)),     # feat tile (pipelined)
            pl.BlockSpec((Db, H), lambda i: (0, 0)),      # W1[:Db]   (resident, bf16)
            pl.BlockSpec((Df, H), lambda i: (0, 0)),      # W1[Db:]   (resident, bf16)
            pl.BlockSpec((1, H), lambda i: (0, 0)),       # b1        (resident, f32)
            pl.BlockSpec((1, H), lambda i: (0, 0)),       # W2 row    (resident, bf16)
            pl.BlockSpec(memory_space=pltpu.MemorySpace.SMEM),  # b2 scalar in SMEM
        ],
        out_specs=pl.BlockSpec((1, TB), lambda i: (0, i)),  # lane-dense output
        compiler_params=pltpu.CompilerParams(
            dimension_semantics=("parallel",)),
        cost_estimate=pl.CostEstimate(
            flops=flops,
            transcendentals=B * (H + 1),                  # tanh(H) + sigmoid(1) per row
            bytes_accessed=bytes_accessed),
    )(bert_vector, feature_vector, w1b, w1f, b1, w2r, b2)

    return out.reshape(B, 1)


def init_params(key, in_features=49, hidden_size=128, out_features=1):
    """Deterministic PyTorch-style (uniform +/- 1/sqrt(fan_in)) init, f32."""
    k1, k2, k3, k4 = jax.random.split(key, 4)
    lim1 = 1.0 / jnp.sqrt(in_features)
    lim2 = 1.0 / jnp.sqrt(hidden_size)
    # stored as (in, out) so the math is x @ W  (== x @ W_torch.T)
    w1 = jax.random.uniform(k1, (in_features, hidden_size), jnp.float32, -lim1, lim1)
    b1 = jax.random.uniform(k2, (1, hidden_size), jnp.float32, -lim1, lim1)
    w2 = jax.random.uniform(k3, (hidden_size, out_features), jnp.float32, -lim2, lim2)
    b2 = jax.random.uniform(k4, (1, out_features), jnp.float32, -lim2, lim2)
    return {"w1": w1, "b1": b1, "w2": w2, "b2": b2}


def prepare_kernel_params(params, bert_dim):
    """One-time repack: split W1 at the bert/feature boundary, bf16 MXU weights,
    fc2 column transposed into a (1, H) bf16 row, b2 flattened to a SMEM scalar."""
    w1, b1, w2, b2 = params["w1"], params["b1"], params["w2"], params["b2"]
    return {
        "w1_bert": w1[:bert_dim].astype(jnp.bfloat16),   # (Db, H) bf16
        "w1_feat": w1[bert_dim:].astype(jnp.bfloat16),   # (Df, H) bf16
        "b1": b1.astype(jnp.float32),                    # (1, H) f32
        "w2_row": w2.T.astype(jnp.bfloat16),             # (1, H) bf16 (MXU fc2)
        "b2": b2.reshape(-1).astype(jnp.float32),        # (1,)  f32 (SMEM scalar)
    }


def _reference_f32(feature_vector, bert_vector, params):
    """Original module semantics (inference), pure f32."""
    x = jnp.concatenate([bert_vector, feature_vector], axis=1)
    h = jnp.tanh(x @ params["w1"] + params["b1"])
    return jax.nn.sigmoid(h @ params["w2"] + params["b2"])


def _reference_kernel_path(feature_vector, bert_vector, kp):
    """Mirrors the kernel numerics (bf16 operands on both matmuls, f32 accumulation)."""
    fb = feature_vector.astype(jnp.bfloat16)
    bb = bert_vector.astype(jnp.bfloat16)
    h = (jnp.dot(bb, kp["w1_bert"], preferred_element_type=jnp.float32)
         + jnp.dot(fb, kp["w1_feat"], preferred_element_type=jnp.float32))
    h = jnp.tanh(h + kp["b1"])
    o = jax.lax.dot_general(kp["w2_row"], h.astype(jnp.bfloat16),
                            dimension_numbers=(((1,), (1,)), ((), ())),
                            preferred_element_type=jnp.float32)       # (1, B)
    return jax.nn.sigmoid(o + kp["b2"][0]).reshape(-1, 1)


if __name__ == "__main__":
    key = jax.random.PRNGKey(0)
    kp_key, kf, kb = jax.random.split(key, 3)

    batch = 8
    bert_dim = 32            # bert_vector features
    feat_dim = 17            # feature_vector features; 32 + 17 = 49 = fc1.in_features
    hidden = 128
    out_dim = 1

    params = init_params(kp_key, in_features=bert_dim + feat_dim,
                         hidden_size=hidden, out_features=out_dim)
    kparams = prepare_kernel_params(params, bert_dim)

    feature_vector = jax.random.normal(kf, (batch, feat_dim), jnp.float32)
    bert_vector = jax.random.normal(kb, (batch, bert_dim), jnp.float32)

    out = neural_net_forward(feature_vector, bert_vector, kparams)
    out = jax.block_until_ready(out)
    assert out.shape == (batch, out_dim), out.shape

    # Exact-path check (same bf16-MXU / f32-accumulate numerics as the kernel).
    ref_bf16 = _reference_kernel_path(feature_vector, bert_vector, kparams)
    assert jnp.allclose(out, ref_bf16, atol=1e-4, rtol=1e-4), "mismatch vs bf16-path reference"

    # Semantic check vs the original pure-f32 module forward
    # (only bf16 rounding of weights/activations separates the two).
    ref_f32 = _reference_f32(feature_vector, bert_vector, params)
    assert jnp.allclose(out, ref_f32, atol=2e-2, rtol=2e-2), "mismatch vs f32 reference"

    print("KERNEL_OK")
</pallas_src>

<mosaic_0001>
module attributes {stable_mosaic.version = 11 : i64} {
  func.func @_mlp_kernel(%arg0: i32, %arg1: memref<8x32xbf16, #tpu.memory_space<vmem>>, %arg2: memref<8x17xbf16, #tpu.memory_space<vmem>>, %arg3: memref<32x128xbf16, #tpu.memory_space<vmem>>, %arg4: memref<17x128xbf16, #tpu.memory_space<vmem>>, %arg5: memref<1x128xf32, #tpu.memory_space<vmem>>, %arg6: memref<1x128xbf16, #tpu.memory_space<vmem>>, %arg7: memref<1xf32, #tpu.memory_space<smem>>, %arg8: memref<1x8xf32, #tpu.memory_space<vmem>>) attributes {dimension_semantics = [#tpu.dimension_semantics<parallel>], iteration_bounds = array<i64: 1>, scalar_prefetch = 0 : i64, scratch_operands = 0 : i64, tpu.core_type = #tpu.core_type<tc>, window_params = [{transform_indices = @transform_0, window_bounds = array<i64: 8, 32>}, {transform_indices = @transform_1, window_bounds = array<i64: 8, 17>}, {pipeline_mode = #tpu.pipeline_mode<synchronous>, transform_indices = @transform_2, window_bounds = array<i64: 32, 128>}, {pipeline_mode = #tpu.pipeline_mode<synchronous>, transform_indices = @transform_3, window_bounds = array<i64: 17, 128>}, {pipeline_mode = #tpu.pipeline_mode<synchronous>, transform_indices = @transform_4, window_bounds = array<i64: 1, 128>}, {pipeline_mode = #tpu.pipeline_mode<synchronous>, transform_indices = @transform_5, window_bounds = array<i64: 1, 128>}, {transform_indices = @transform_6, window_bounds = array<i64: 1>}, {transform_indices = @transform_7, window_bounds = array<i64: 1, 8>}]} {
    %c0 = arith.constant 0 : index
    %c0_0 = arith.constant 0 : index
    %0 = vector.load %arg1[%c0, %c0_0] : memref<8x32xbf16, #tpu.memory_space<vmem>>, vector<8x32xbf16>
    %c0_1 = arith.constant 0 : index
    %c0_2 = arith.constant 0 : index
    %1 = vector.load %arg3[%c0_1, %c0_2] : memref<32x128xbf16, #tpu.memory_space<vmem>>, vector<32x128xbf16>
    %cst = arith.constant dense<0.000000e+00> : vector<8x128xf32>
    %2 = tpu.matmul %0, %1, %cst {dimension_numbers = #tpu.dot_dimension_numbers<[1], [0], [0], [1], [0, 0, 1, 1], [], []>} : vector<8x32xbf16>, vector<32x128xbf16>, vector<8x128xf32> -> vector<8x128xf32>
    %c0_3 = arith.constant 0 : index
    %c0_4 = arith.constant 0 : index
    %3 = vector.load %arg2[%c0_3, %c0_4] : memref<8x17xbf16, #tpu.memory_space<vmem>>, vector<8x17xbf16>
    %c0_5 = arith.constant 0 : index
    %c0_6 = arith.constant 0 : index
    %4 = vector.load %arg4[%c0_5, %c0_6] : memref<17x128xbf16, #tpu.memory_space<vmem>>, vector<17x128xbf16>
    %cst_7 = arith.constant dense<0.000000e+00> : vector<8x128xf32>
    %5 = tpu.matmul %3, %4, %cst_7 {dimension_numbers = #tpu.dot_dimension_numbers<[1], [0], [0], [1], [0, 0, 1, 1], [], []>} : vector<8x17xbf16>, vector<17x128xbf16>, vector<8x128xf32> -> vector<8x128xf32>
    %6 = arith.addf %2, %5 : vector<8x128xf32>
    %c0_8 = arith.constant 0 : index
    %c0_9 = arith.constant 0 : index
    %7 = vector.load %arg5[%c0_8, %c0_9] : memref<1x128xf32, #tpu.memory_space<vmem>>, vector<1x128xf32>
    %8 = vector.broadcast %7 : vector<1x128xf32> to vector<8x128xf32>
    %9 = arith.addf %6, %8 : vector<8x128xf32>
    %10 = math.tanh %9 : vector<8x128xf32>
    %c0_10 = arith.constant 0 : index
    %c0_11 = arith.constant 0 : index
    %11 = vector.load %arg6[%c0_10, %c0_11] : memref<1x128xbf16, #tpu.memory_space<vmem>>, vector<1x128xbf16>
    %12 = arith.truncf %10 : vector<8x128xf32> to vector<8x128xbf16>
    %cst_12 = arith.constant dense<0.000000e+00> : vector<1x8xf32>
    %13 = tpu.matmul %11, %12, %cst_12 {dimension_numbers = #tpu.dot_dimension_numbers<[1], [1], [0], [0], [0, 0, 1, 0], [], []>} : vector<1x128xbf16>, vector<8x128xbf16>, vector<1x8xf32> -> vector<1x8xf32>
    %c0_13 = arith.constant 0 : index
    %14 = memref.load %arg7[%c0_13] : memref<1xf32, #tpu.memory_space<smem>>
    %15 = vector.broadcast %14 : f32 to vector<1x8xf32>
    %16 = arith.addf %13, %15 : vector<1x8xf32>
    %17 = arith.negf %16 : vector<1x8xf32>
    %18 = math.exp %17 : vector<1x8xf32>
    %cst_14 = arith.constant 1.000000e+00 : f32
    %19 = vector.broadcast %cst_14 : f32 to vector<1x8xf32>
    %20 = arith.addf %19, %18 : vector<1x8xf32>
    %21 = arith.divf %19, %20 : vector<1x8xf32>
    %c0_15 = arith.constant 0 : index
    %c0_16 = arith.constant 0 : index
    %22 = vector.load %arg8[%c0_15, %c0_16] : memref<1x8xf32, #tpu.memory_space<vmem>>, vector<1x8xf32>
    tpu.vector_store %arg8[%c0_15, %c0_16], %21 {strides = array<i32>} : memref<1x8xf32, #tpu.memory_space<vmem>>, vector<1x8xf32>,
    return
  }
  func.func @transform_0(%arg0: i32) -> (i32, i32) {
    %c0_i32 = arith.constant 0 : i32
    %c0_i32_0 = arith.constant 0 : i32
    return %arg0, %c0_i32 : i32, i32
  }
  func.func @transform_1(%arg0: i32) -> (i32, i32) {
    %c0_i32 = arith.constant 0 : i32
    %c0_i32_0 = arith.constant 0 : i32
    return %arg0, %c0_i32 : i32, i32
  }
  func.func @transform_2(%arg0: i32) -> (i32, i32) {
    %c0_i32 = arith.constant 0 : i32
    %c0_i32_0 = arith.constant 0 : i32
    %c0_i32_1 = arith.constant 0 : i32
    return %c0_i32, %c0_i32_0 : i32, i32
  }
  func.func @transform_3(%arg0: i32) -> (i32, i32) {
    %c0_i32 = arith.constant 0 : i32
    %c0_i32_0 = arith.constant 0 : i32
    %c0_i32_1 = arith.constant 0 : i32
    return %c0_i32, %c0_i32_0 : i32, i32
  }
  func.func @transform_4(%arg0: i32) -> (i32, i32) {
    %c0_i32 = arith.constant 0 : i32
    %c0_i32_0 = arith.constant 0 : i32
    %c0_i32_1 = arith.constant 0 : i32
    return %c0_i32, %c0_i32_0 : i32, i32
  }
  func.func @transform_5(%arg0: i32) -> (i32, i32) {
    %c0_i32 = arith.constant 0 : i32
    %c0_i32_0 = arith.constant 0 : i32
    %c0_i32_1 = arith.constant 0 : i32
    return %c0_i32, %c0_i32_0 : i32, i32
  }
  func.func @transform_6(%arg0: i32) -> i32 {
    %c0_i32 = arith.constant 0 : i32
    %c0_i32_0 = arith.constant 0 : i32
    return %c0_i32 : i32
  }
  func.func @transform_7(%arg0: i32) -> (i32, i32) {
    %c0_i32 = arith.constant 0 : i32
    %c0_i32_0 = arith.constant 0 : i32
    return %c0_i32, %arg0 : i32, i32
  }
}

</mosaic_0001>

<llo_original>
// kernel: tpu_custom_call.1
$region0: #{tpu_custom_call.1}
  #allocation0 [shape = 'u32[]', space=smem, size = 0x4, offset = 0x4, fixed_abs, tag = 'smem constant byte address 0x4 - core index']
  #allocation1 [shape = 'u32[144,128]{1,0:T(1,128)}', space=vmem, size = 0x12000, scoped, tag = 'internal scratch']
  #allocation2 [shape = 'f32[1]{0:T(128)S(6)}', space=smem, size = 0x200, scoped, tag = 'scoped memory for tpu_custom_call.1']
  %s0 = inlined_call_operand.hbm [shape: bf16[8,32], index: 0, kind: input, shape index: {}]
  %s1 = inlined_call_operand.hbm [shape: bf16[8,17], index: 1, kind: input, shape index: {}]
  %s2 = inlined_call_operand.hbm [shape: bf16[32,128], index: 2, kind: input, shape index: {}]
  %s3 = inlined_call_operand.vmem [shape: bf16[17,128], index: 3, kind: input, shape index: {}]
  %s4 = inlined_call_operand.vmem [shape: f32[1,128], index: 4, kind: input, shape index: {}]
  %s5 = inlined_call_operand.vmem [shape: bf16[1,128], index: 5, kind: input, shape index: {}]
  %s6 = inlined_call_operand.<no memory space> [shape: f32[1], index: 6, kind: input, shape index: {}]
  %s7 = inlined_call_operand.hbm [shape: f32[1,8], index: 7, kind: output, shape index: {}]
  %s8 = sld [smem:[#allocation0]]
  $region50: #{tpu_custom_call.1} parent=0
    _
  %s10 = ssub.s32 1, %s8
  %s11 = scalar_select 0, %s10, %s8
  %12 = sst [smem:[#allocation2]] %s6
  $region1: #{tpu_custom_call.1} parent=0
    #allocation3 [shape = 'u8[2048]{0}', space=vmem, size = 0x800, scoped, tag = 'input window, operand 0, single buffered']
    #allocation4 [shape = 's32[1]{0}', space=sflag, size = 0x4, scoped, tag = 'scoped memory for tpu_custom_call.1']
    #allocation5 [shape = 's32[1]{0}', space=sflag, size = 0x4, scoped, tag = 'scoped memory for tpu_custom_call.1']
    #allocation6 [shape = 'u8[2048]{0}', space=vmem, size = 0x800, scoped, tag = 'input window, operand 1, single buffered']
    #allocation7 [shape = 's32[1]{0}', space=sflag, size = 0x4, scoped, tag = 'scoped memory for tpu_custom_call.1']
    #allocation8 [shape = 'u8[8192]{0}', space=vmem, size = 0x2000, scoped, tag = 'input window, operand 2, single buffered']
    #allocation9 [shape = 'u8[512]{0}', space=vmem, size = 0x400, scoped, tag = 'output window, operand 0, single buffered']
    %13 = vsyncpa [#allocation4], 0
    %14 = vsyncpa [#allocation7], 0
    %15 = vsyncpa [#allocation5], 0
    // Predicated region
    $region2: #{tpu_custom_call.1} parent=1 // pred_check
      _
    $region3: #{tpu_custom_call.1} parent=1 // pred_check_branch
      %17 = sbr.rel (0) target = $region5
    $region4: #{tpu_custom_call.1} parent=1 // pred_region
      %s19 = ssub.s32 64, 64
      %20 = vsyncadd [#allocation4], %s19
      %s22 = sshll.u32 [#allocation3], 4
      %s23 = int_to_ptr.vmem [resolvable:$true] %s22
      %25 = dma.hbm_to_vmem [thread:$0]  %s0, 64, %s23, [#allocation4]
    $region5: #{tpu_custom_call.1} parent=1 // pred_fallthru
      _
    // Predicated region
    $region6: #{tpu_custom_call.1} parent=1 // pred_check
      _
    $region7: #{tpu_custom_call.1} parent=1 // pred_check_branch
      %27 = sbr.rel (0) target = $region9
    $region8: #{tpu_custom_call.1} parent=1 // pred_region
      %s29 = ssub.s32 64, 64
      %30 = vsyncadd [#allocation7], %s29
      %s32 = sshll.u32 [#allocation6], 4
      %s33 = int_to_ptr.vmem [resolvable:$true] %s32
      %35 = dma.hbm_to_vmem [thread:$0]  %s1, 64, %s33, [#allocation7]
    $region9: #{tpu_custom_call.1} parent=1 // pred_fallthru
      _
    // Predicated region
    $region10: #{tpu_custom_call.1} parent=1 // pred_check
      _
    $region11: #{tpu_custom_call.1} parent=1 // pred_check_branch
      %37 = sbr.rel (0) target = $region13
    $region12: #{tpu_custom_call.1} parent=1 // pred_region
      %s39 = ssub.s32 256, 256
      %40 = vsyncadd [#allocation7], %s39
      %s41 = sshll.u32 [#allocation8], 4
      %s42 = int_to_ptr.vmem [resolvable:$true] %s41
      %47 = dma.hbm_to_vmem [thread:$0]  %s2, 256, %s42, [#allocation7], 64, 64, 4
    $region13: #{tpu_custom_call.1} parent=1 // pred_fallthru
      _
    // Predicated region
    $region14: #{tpu_custom_call.1} parent=1 // pred_check
      _
    $region15: #{tpu_custom_call.1} parent=1 // pred_check_branch
      %49 = sbr.rel (0) target = $region17
    $region16: #{tpu_custom_call.1} parent=1 // pred_region
      _
    $region17: #{tpu_custom_call.1} parent=1 // pred_fallthru
      _
    // Predicated region
    $region18: #{tpu_custom_call.1} parent=1 // pred_check
      _
    $region19: #{tpu_custom_call.1} parent=1 // pred_check_branch
      %51 = sbr.rel (0) target = $region21
    $region20: #{tpu_custom_call.1} parent=1 // pred_region
      _
    $region21: #{tpu_custom_call.1} parent=1 // pred_fallthru
      _
    // Predicated region
    $region22: #{tpu_custom_call.1} parent=1 // pred_check
      _
    $region23: #{tpu_custom_call.1} parent=1 // pred_check_branch
      %53 = sbr.rel (0) target = $region25
    $region24: #{tpu_custom_call.1} parent=1 // pred_region
      _
    $region25: #{tpu_custom_call.1} parent=1 // pred_fallthru
      _
    // Predicated region
    $region26: #{tpu_custom_call.1} parent=1 // pred_check
      _
    $region27: #{tpu_custom_call.1} parent=1 // pred_check_branch
      %55 = sbr.rel (0) target = $region29
    $region28: #{tpu_custom_call.1} parent=1 // pred_region
      _
    $region29: #{tpu_custom_call.1} parent=1 // pred_fallthru
      _
    // Predicated region
    $region30: #{tpu_custom_call.1} parent=1 // pred_check
      _
    $region31: #{tpu_custom_call.1} parent=1 // pred_check_branch
      %57 = sbr.rel (0) target = $region33
    $region32: #{tpu_custom_call.1} parent=1 // pred_region
      %58 = dma.done [#allocation4], 64
    $region33: #{tpu_custom_call.1} parent=1 // pred_fallthru
      _
    // Predicated region
    $region34: #{tpu_custom_call.1} parent=1 // pred_check
      _
    $region35: #{tpu_custom_call.1} parent=1 // pred_check_branch
      %60 = sbr.rel (0) target = $region37
    $region36: #{tpu_custom_call.1} parent=1 // pred_region
      %61 = dma.done [#allocation7], 64
    $region37: #{tpu_custom_call.1} parent=1 // pred_fallthru
      _
    // Predicated region
    $region38: #{tpu_custom_call.1} parent=1 // pred_check
      _
    $region39: #{tpu_custom_call.1} parent=1 // pred_check_branch
      %63 = sbr.rel (0) target = $region41
    $region40: #{tpu_custom_call.1} parent=1 // pred_region
      %64 = dma.done [#allocation7], 256
    $region41: #{tpu_custom_call.1} parent=1 // pred_fallthru
      _
    %v66 = vld [vmem:[#allocation3] sm:$0xf]
    %v67 = vld [vmem:[#allocation8] sm:$0xf]
    %v68 = vld [vmem:[#allocation8 + $0x4] sm:$0xf]
    %v69 = vld [vmem:[#allocation8 + $0x8] sm:$0xf]
    %v70 = vld [vmem:[#allocation8 + $0xc] sm:$0xf]
    %v71 = vld [vmem:[#allocation6] sm:$0xf]
    %v72 = vld [vmem:[%s3] sm:$0xf]
    %v73 = vld [vmem:[%s3 + $0x4] sm:$0xf]
    %v74 = vld [vmem:[%s3 + $0x8] sm:$0x1]
    %v78 = vunpack.c.l.b16 %v72
    %v79 = vunpack.c.l.b16 %v73
    %v80 = vunpack.c.l.b16 %v74
    %v81 = vpack.c.b16 %v79, %v78
    %v82 = vpack.c.b16 %v80, %v80
    %vm84 = vcmask 138240
    %v86 = vsel %vm84, %v71, 0
    %vm88 = vcmask 1040384
    %v89 = vsel 0, 4294967295, 65535
    %v90 = vsel %vm88, %v89, 0
    %v92 = vand.u32 %v82, %v90
    %94 = vmatprep.subr.bf16.mxu0 0
    %95 = vmatpush1.bf16.msra.mxu0 %v81
    %96 = vmatprep.subr.bf16.mxu0 0
    %97 = vmatpush1.bf16.msra.mxu0 %v92
    %98 = vmatprep.subr.bf16.mxu0 0
    %99 = vmatpush1.bf16.msra.mxu0 0
    %100 = vmatprep.subr.bf16.mxu0 0
    %101 = vmatpush1.bf16.msra.mxu0 0
    %102 = vmatprep.subr.bf16.mxu0 0
    %103 = vmatpush1.bf16.msra.mxu0 0
    %104 = vmatprep.subr.bf16.mxu0 0
    %105 = vmatpush1.bf16.msra.mxu0 0
    %106 = vmatprep.subr.bf16.mxu0 0
    %107 = vmatpush1.bf16.msra.mxu0 0
    %108 = vmatprep.subr.bf16.mxu0 0
    %109 = vmatpush1.bf16.msra.mxu0 0
    %110 = vmatprep.subr.bf16.mxu0 0
    %111 = vmatpush1.bf16.msra.mxu0 0
    %112 = vmatprep.subr.bf16.mxu0 0
    %113 = vmatpush1.bf16.msra.mxu0 0
    %114 = vmatprep.subr.bf16.mxu0 0
    %115 = vmatpush1.bf16.msra.mxu0 0
    %116 = vmatprep.subr.bf16.mxu0 0
    %117 = vmatpush1.bf16.msra.mxu0 0
    %118 = vmatprep.subr.bf16.mxu0 0
    %119 = vmatpush1.bf16.msra.mxu0 0
    %120 = vmatprep.subr.bf16.mxu0 0
    %121 = vmatpush1.bf16.msra.mxu0 0
    %122 = vmatprep.subr.bf16.mxu0 0
    %123 = vmatpush1.bf16.msra.mxu0 0
    %124 = vmatprep.subr.bf16.mxu0 0
    %125 = vmatpush1.bf16.msra.mxu0 0
    %126 = vmatprep.mubr.bf16.mxu0 0
    %127 = vmatmul.mubr.bf16.gmra.mrb[0].mxu0 %v86
    %v128 = vpop.f32.mrb[0].mxu0
    %v129 = vadd.f32 0.0, %v128
    %v130 = vpop.f32.mrb[0].mxu0
    %v131 = vpop.f32.mrb[0].mxu0
    %v132 = vpop.f32.mrb[0].mxu0
    %133 = vdwg.mxu0
    %v138 = vunpack.c.l.b16 %v67
    %v139 = vunpack.c.l.b16 %v68
    %v140 = vunpack.c.l.b16 %v69
    %v141 = vunpack.c.l.b16 %v70
    %v142 = vpack.c.b16 %v139, %v138
    %v143 = vpack.c.b16 %v141, %v140
    %vm146 = vcmask 261120
    %v148 = vsel %vm146, %v66, 0
    %150 = vmatprep.subr.bf16.mxu0 0
    %151 = vmatpush1.bf16.msra.mxu0 %v142
    %152 = vmatprep.subr.bf16.mxu0 0
    %153 = vmatpush1.bf16.msra.mxu0 %v143
    %154 = vmatprep.subr.bf16.mxu0 0
    %155 = vmatpush1.bf16.msra.mxu0 0
    %156 = vmatprep.subr.bf16.mxu0 0
    %157 = vmatpush1.bf16.msra.mxu0 0
    %158 = vmatprep.subr.bf16.mxu0 0
    %159 = vmatpush1.bf16.msra.mxu0 0
    %160 = vmatprep.subr.bf16.mxu0 0
    %161 = vmatpush1.bf16.msra.mxu0 0
    %162 = vmatprep.subr.bf16.mxu0 0
    %163 = vmatpush1.bf16.msra.mxu0 0
    %164 = vmatprep.subr.bf16.mxu0 0
    %165 = vmatpush1.bf16.msra.mxu0 0
    %166 = vmatprep.subr.bf16.mxu0 0
    %167 = vmatpush1.bf16.msra.mxu0 0
    %168 = vmatprep.subr.bf16.mxu0 0
    %169 = vmatpush1.bf16.msra.mxu0 0
    %170 = vmatprep.subr.bf16.mxu0 0
    %171 = vmatpush1.bf16.msra.mxu0 0
    %172 = vmatprep.subr.bf16.mxu0 0
    %173 = vmatpush1.bf16.msra.mxu0 0
    %174 = vmatprep.subr.bf16.mxu0 0
    %175 = vmatpush1.bf16.msra.mxu0 0
    %176 = vmatprep.subr.bf16.mxu0 0
    %177 = vmatpush1.bf16.msra.mxu0 0
    %178 = vmatprep.subr.bf16.mxu0 0
    %179 = vmatpush1.bf16.msra.mxu0 0
    %180 = vmatprep.subr.bf16.mxu0 0
    %181 = vmatpush1.bf16.msra.mxu0 0
    %182 = vmatprep.mubr.bf16.mxu0 0
    %183 = vmatmul.mubr.bf16.gmra.mrb[0].mxu0 %v148
    %v184 = vpop.f32.mrb[0].mxu0
    %v185 = vadd.f32 %v129, %v184
    %v186 = vpop.f32.mrb[0].mxu0
    %v187 = vpop.f32.mrb[0].mxu0
    %v188 = vpop.f32.mrb[0].mxu0
    %189 = vdwg.mxu0
    %v190 = vld [vmem:[%s4] sm:$0x1]
    %v192 = vlaneseq
    %v193 = vshrl.u32 %v192, 7
    %v194 = vsub.s32 0, %v193
    %v195 = vrot.slane %v190, %v194
    %v197 = vadd.f32 %v185, %v195
    %v198 = vtanh.pop %v197
    %v199 = vld [vmem:[%s5] sm:$0x1]
    %v200 = vpack.c.bf16 %v198, %v198
    %s201 = sld [smem:[#allocation2]]
    %v202 = vstv %s201
    %203 = vmatprep.subr.bf16.mxu0 0
    %204 = vmatpush1.bf16.xpose.msra.mxu0 %v200
    %205 = vmatprep.subr.bf16.mxu0 0
    %206 = vmatpush1.bf16.xpose.msra.mxu0 0
    %207 = vmatprep.subr.bf16.mxu0 0
    %208 = vmatpush1.bf16.xpose.msra.mxu0 0
    %209 = vmatprep.subr.bf16.mxu0 0
    %210 = vmatpush1.bf16.xpose.msra.mxu0 0
    %211 = vmatprep.subr.bf16.mxu0 0
    %212 = vmatpush1.bf16.xpose.msra.mxu0 0
    %213 = vmatprep.subr.bf16.mxu0 0
    %214 = vmatpush1.bf16.xpose.msra.mxu0 0
    %215 = vmatprep.subr.bf16.mxu0 0
    %216 = vmatpush1.bf16.xpose.msra.mxu0 0
    %217 = vmatprep.subr.bf16.mxu0 0
    %218 = vmatpush1.bf16.xpose.msra.mxu0 0
    %219 = vmatprep.subr.bf16.mxu0 0
    %220 = vmatpush1.bf16.xpose.msra.mxu0 0
    %221 = vmatprep.subr.bf16.mxu0 0
    %222 = vmatpush1.bf16.xpose.msra.mxu0 0
    %223 = vmatprep.subr.bf16.mxu0 0
    %224 = vmatpush1.bf16.xpose.msra.mxu0 0
    %225 = vmatprep.subr.bf16.mxu0 0
    %226 = vmatpush1.bf16.xpose.msra.mxu0 0
    %227 = vmatprep.subr.bf16.mxu0 0
    %228 = vmatpush1.bf16.xpose.msra.mxu0 0
    %229 = vmatprep.subr.bf16.mxu0 0
    %230 = vmatpush1.bf16.xpose.msra.mxu0 0
    %231 = vmatprep.subr.bf16.mxu0 0
    %232 = vmatpush1.bf16.xpose.msra.mxu0 0
    %233 = vmatprep.subr.bf16.mxu0 0
    %234 = vmatpush1.bf16.xpose.msra.mxu0 0
    %235 = vmatprep.mubr.bf16.mxu0 0
    %236 = vmatmul.mubr.bf16.gmra.mrb[0].mxu0 %v199
    %v237 = vpop.f32.mrb[0].mxu0
    %v238 = vadd.f32 %v202, %v237
    %v239 = vpop.f32.mrb[0].mxu0
    %v240 = vpop.f32.mrb[0].mxu0
    %v241 = vpop.f32.mrb[0].mxu0
    %242 = vdwg.mxu0
    %v243 = vxor.u32 %v238, 2147483648
    %v244 = vmul.f32 %v243, 1.442695
    %v245 = vpow.pop %v244
    %v246 = vadd.f32 %v245, 1.0
    %v247 = vrcp.pop %v246
    %v248 = vmul.f32 1.0, %v247
    %vm249 = vcmask 57344
    %250 = vst.msk [vmem:[#allocation9] sm:$0x1] %vm249, %v248
    // Predicated region
    $region42: #{tpu_custom_call.1} parent=1 // pred_check
      _
    $region43: #{tpu_custom_call.1} parent=1 // pred_check_branch
      %252 = sbr.rel (0) target = $region45
    $region44: #{tpu_custom_call.1} parent=1 // pred_region
      %s254 = ssub.s32 16, 16
      %255 = vsyncadd [#allocation5], %s254
      %s257 = sshll.u32 [#allocation9], 4
      %s258 = int_to_ptr.vmem [resolvable:$true] %s257
      %260 = dma.vmem_to_hbm [thread:$0]  %s258, 16, %s7, [#allocation5]
    $region45: #{tpu_custom_call.1} parent=1 // pred_fallthru
      _
    // Predicated region
    $region46: #{tpu_custom_call.1} parent=1 // pred_check
      _
    $region47: #{tpu_custom_call.1} parent=1 // pred_check_branch
      %262 = sbr.rel (0) target = $region49
    $region48: #{tpu_custom_call.1} parent=1 // pred_region
      %263 = dma.done [#allocation5], 16
    $region49: #{tpu_custom_call.1} parent=1 // pred_fallthru
      _
    %264 = vsyncpa [#allocation4], 1
    %265 = vsyncpa [#allocation7], 1
    %266 = vsyncpa [#allocation5], 1

</llo_original>
